<compile_context>
chip_gen: v7x
topology: tpu7x:2x2x1
jax: 0.10.0
libtpu: 0.0.40
codegen_flags: <defaults>
</compile_context>

<pallas_src>
import functools

import jax
import jax.numpy as jnp
from jax.experimental import pallas as pl
from jax.experimental.pallas import tpu as pltpu


def _stats_rows(h):
    """Per-tile [sum; centered M2] padded to a full (8, lanes) sublane tile."""
    n = h.shape[0]
    s1 = jnp.sum(h, axis=0, keepdims=True)
    d = h - s1 / n
    m2 = jnp.sum(d * d, axis=0, keepdims=True)
    return jnp.concatenate(
        [s1, m2, jnp.zeros((6, h.shape[1]), jnp.float32)], axis=0)


def _conv1_stats_kernel(xcat_ref, w1_ref, st_ref):
    """bn1 partial stats of conv1(x) -- no activation slab is written to HBM."""
    h1 = jnp.dot(xcat_ref[...], w1_ref[...], preferred_element_type=jnp.float32)
    st_ref[...] = _stats_rows(h1)


def _conv2_stats_kernel(xcat_ref, w1_ref, w2a_ref, w2b_ref, *rest,
                        seq_len, cin, identity_skip):
    """Recompute conv1, bn1+PReLU, conv2 (two accumulating dots) + skip,
    write h2_raw slab + bn2 partial stats."""
    if identity_skip:
        p1_ref, h2_ref, st_ref = rest
        wsk_ref = None
    else:
        wsk_ref, p1_ref, h2_ref, st_ref = rest

    xall = xcat_ref[...]                               # (TR, 2*Cin)
    h1 = jnp.dot(xall, w1_ref[...], preferred_element_type=jnp.float32)

    p = p1_ref[...]                                    # (8, C) packed params
    scale1, shift1, alpha1 = p[0:1, :], p[1:2, :], p[2:3, :]
    h1 = h1 * scale1 + shift1                          # bn1 (global stats folded)
    h1 = jnp.where(h1 > 0, h1, alpha1 * h1)            # act1 (PReLU)

    # Causal shift inside the tile (tile rows are a multiple of seq_len, so the
    # shift never crosses a tile); zero the wrap at every sequence start.
    h1s = pltpu.roll(h1, shift=1, axis=0)
    row = jax.lax.broadcasted_iota(jnp.int32, (h1.shape[0], 1), 0)
    h1s = jnp.where(row % seq_len == 0, 0.0, h1s)

    # conv2: two accumulating dots instead of a lane-concat + wide-K dot.
    h2 = jnp.dot(h1s, w2a_ref[...], preferred_element_type=jnp.float32)
    h2 = h2 + jnp.dot(h1, w2b_ref[...], preferred_element_type=jnp.float32)

    if identity_skip:
        h2 = h2 + xall[:, cin:2 * cin]                 # x[t], VPU add (Cin == Cout)
    else:
        h2 = h2 + jnp.dot(xall, wsk_ref[...],          # fused skip-conv taps
                          preferred_element_type=jnp.float32)

    h2_ref[...] = h2
    st_ref[...] = _stats_rows(h2)


def _bn_act_kernel(h2_ref, p2_ref, o_ref):
    """out = PReLU(bn2(h2_raw)) with bn2 folded into per-channel scale/shift."""
    p = p2_ref[...]
    scale2, shift2, alpha2 = p[0:1, :], p[1:2, :], p[2:3, :]
    h = h2_ref[...] * scale2 + shift2
    o_ref[...] = jnp.where(h > 0, h, alpha2 * h)


def _rows_per_tile(n_seq, seq_len, max_rows):
    """Largest row tile that is a whole number of sequences, divides N*L, is
    sublane-aligned, and keeps the grid at >= 2 steps (v7x megacore)."""
    total = n_seq * seq_len
    best = None
    for k in range(1, n_seq + 1):
        if n_seq % k:
            continue
        tr = k * seq_len
        if tr % 8 != 0 and tr != total:
            continue
        if tr > max_rows:
            continue
        if n_seq >= 2 and k == n_seq:
            continue                     # keep at least 2 grid steps
        best = tr
    if best is None:
        # TODO(synk): intra-sequence halo tiling for huge N*L; whole-slab fallback.
        best = total
    return best


def _fold_bn_prelu(tile_stats, rows_per_tile, count, gamma, beta, alpha, eps):
    """Combine per-tile (sum, centered M2) with Chan's parallel formula, fold
    training-mode BN (biased variance) + PReLU slope into one (8, C) block."""
    c = tile_stats.shape[-1]
    st = tile_stats.reshape(-1, 8, c)
    sums, m2s = st[:, 0, :], st[:, 1, :]
    tile_means = sums / rows_per_tile
    mean = jnp.sum(sums, axis=0) / count
    var = (jnp.sum(m2s, axis=0)
           + rows_per_tile * jnp.sum((tile_means - mean) ** 2, axis=0)) / count
    var = jnp.maximum(var, 0.0)
    inv = jax.lax.rsqrt(var + eps)
    scale = gamma.astype(jnp.float32) * inv
    shift = beta.astype(jnp.float32) - mean * scale
    packed = jnp.zeros((8, c), jnp.float32)
    return packed.at[0].set(scale).at[1].set(shift).at[2].set(alpha.astype(jnp.float32))


def resnet_block_forward(x_ncl, params, *, eps=1e-5, max_rows_per_tile=4096):
    N, Cin, L = x_ncl.shape
    w1, w2 = params["w1"], params["w2"]
    Cout = w1.shape[0]
    NL = N * L
    TR = _rows_per_tile(N, L, max_rows_per_tile)
    num_tiles = NL // TR

    # --- wrapper-side layout prep (cheap, plain JAX) --------------------------
    # Channels-last slab and its causal shift (zeroed at sequence starts),
    # concatenated along the contraction dim so conv1/skip are single matmuls.
    x3 = jnp.transpose(x_ncl, (0, 2, 1)).astype(jnp.float32)       # (N, L, Cin)
    xs3 = jnp.pad(x3, ((0, 0), (1, 0), (0, 0)))[:, :L, :]          # x[t-1]
    xcat = jnp.concatenate([xs3, x3], axis=2).reshape(NL, 2 * Cin)

    def stack_taps(w):   # (Cout, C_, 3) -> (2*C_, Cout): rows = [tap0; tap1]
        return jnp.concatenate([w[:, :, 0].T, w[:, :, 1].T], axis=0).astype(jnp.float32)

    W1 = stack_taps(w1)                                            # (2*Cin, Cout)
    W2a = w2[:, :, 0].T.astype(jnp.float32)                        # tap0 -> h1[t-1]
    W2b = w2[:, :, 1].T.astype(jnp.float32)                        # tap1 -> h1[t]
    ws = params.get("w_skip")
    identity_skip = ws is None
    if identity_skip:
        assert Cin == Cout, "identity skip requires inp_cha == out_cha"
        Wsk = None
    else:
        Wsk = stack_taps(ws)                                       # (2*Cin, Cout)

    row_spec = lambda c: pl.BlockSpec((TR, c), lambda i: (i, 0))
    full_spec = lambda r, c: pl.BlockSpec((r, c), lambda i: (0, 0))
    stats_spec = pl.BlockSpec((8, Cout), lambda i: (i, 0))
    stats_shape = jax.ShapeDtypeStruct((num_tiles * 8, Cout), jnp.float32)
    slab_shape = jax.ShapeDtypeStruct((NL, Cout), jnp.float32)

    # Explicit VMEM budget: double-buffered xcat/h2 tiles + weights, clamped so
    # it never exceeds v7x's 64 MiB physical VMEM.
    tile_bytes = 4 * (2 * TR * 2 * Cin + 2 * TR * Cout + 4 * 8 * Cout)
    vmem_limit = int(min(64 << 20, max(32 << 20, 4 * tile_bytes + (2 << 20))))
    cparams = pltpu.CompilerParams(dimension_semantics=("parallel",),
                                   vmem_limit_bytes=vmem_limit)

    # --- pass 1: bn1 statistics only (no h1 slab round-trip) ------------------
    st1 = pl.pallas_call(
        _conv1_stats_kernel,
        grid=(num_tiles,),
        in_specs=[row_spec(2 * Cin), full_spec(2 * Cin, Cout)],
        out_specs=stats_spec,
        out_shape=stats_shape,
        compiler_params=cparams,
    )(xcat, W1)
    p1 = _fold_bn_prelu(st1, TR, NL, params["g1"], params["b1"], params["a1"], eps)

    # --- pass 2: recompute conv1, bn1+act1, conv2 + skip, bn2 statistics ------
    kernel2 = functools.partial(_conv2_stats_kernel, seq_len=L, cin=Cin,
                                identity_skip=identity_skip)
    in_specs = [row_spec(2 * Cin), full_spec(2 * Cin, Cout),
                full_spec(Cout, Cout), full_spec(Cout, Cout)]
    args = [xcat, W1, W2a, W2b]
    if not identity_skip:
        in_specs.append(full_spec(2 * Cin, Cout))
        args.append(Wsk)
    in_specs.append(full_spec(8, Cout))
    args.append(p1)

    h2_raw, st2 = pl.pallas_call(
        kernel2,
        grid=(num_tiles,),
        in_specs=in_specs,
        out_specs=(row_spec(Cout), stats_spec),
        out_shape=(slab_shape, stats_shape),
        compiler_params=cparams,
    )(*args)
    p2 = _fold_bn_prelu(st2, TR, NL, params["g2"], params["b2"], params["a2"], eps)

    # --- pass 3: bn2 + act2 (slabs are unpadded -> small streaming pass) ------
    out2d = pl.pallas_call(
        _bn_act_kernel,
        grid=(num_tiles,),
        in_specs=[row_spec(Cout), full_spec(8, Cout)],
        out_specs=row_spec(Cout),
        out_shape=slab_shape,
        compiler_params=cparams,
    )(h2_raw, p2)

    out = out2d.reshape(N, L, Cout)
    return jnp.transpose(out, (0, 2, 1))                           # back to NCL


def init_params(key, inp_cha, out_cha, first=True, include_skip=True):
    """Deterministic synthetic parameters matching ResNetBlock.__init__ shapes."""
    k1, k2, k3 = jax.random.split(key, 3)
    w1 = 0.3 * jax.random.normal(k1, (out_cha, inp_cha, 3), jnp.float32)
    w2 = 0.3 * jax.random.normal(k2, (out_cha, out_cha, 3), jnp.float32)
    ws = 0.3 * jax.random.normal(k3, (out_cha, inp_cha, 3), jnp.float32)

    def mask(w, mtype):  # MaskedConv1d: 'A' keeps tap 0; 'B' keeps taps 0,1
        kw = w.shape[-1]
        cut = kw // 2 + (1 if mtype == "B" else 0)
        m = (jnp.arange(kw) < cut).astype(w.dtype)
        return w * m[None, None, :]

    w1 = mask(w1, "A" if first else "B")
    w2 = mask(w2, "B")
    ws = mask(ws, "A" if first else "B") if include_skip else None
    return dict(
        w1=w1, w2=w2, w_skip=ws,
        a1=jnp.full((out_cha,), 0.2, jnp.float32),   # PReLU(out_cha, init=0.2)
        a2=jnp.full((out_cha,), 0.2, jnp.float32),
        g1=jnp.ones((out_cha,), jnp.float32), b1=jnp.zeros((out_cha,), jnp.float32),
        g2=jnp.ones((out_cha,), jnp.float32), b2=jnp.zeros((out_cha,), jnp.float32),
    )


def reference_forward(x_ncl, p, eps=1e-5):
    """Pure-JAX reference using lax.conv (mirrors the PyTorch forward)."""
    def conv(x, w):
        return jax.lax.conv_general_dilated(
            x, w, window_strides=(1,), padding=((1, 1),),
            dimension_numbers=("NCH", "OIH", "NCH"))

    def bn(h, g, b):
        m = jnp.mean(h, axis=(0, 2), keepdims=True)
        v = jnp.mean((h - m) ** 2, axis=(0, 2), keepdims=True)
        return (h - m) / jnp.sqrt(v + eps) * g[None, :, None] + b[None, :, None]

    def prelu(h, a):
        return jnp.where(h > 0, h, a[None, :, None] * h)

    skip = x_ncl if p["w_skip"] is None else conv(x_ncl, p["w_skip"])
    h = prelu(bn(conv(x_ncl, p["w1"]), p["g1"], p["b1"]), p["a1"])
    h = prelu(bn(conv(h, p["w2"]) + skip, p["g2"], p["b2"]), p["a2"])
    return h


if __name__ == "__main__":
    key = jax.random.PRNGKey(0)
    kx1, kp1, kx2, kp2 = jax.random.split(key, 4)

    ok = True

    # Case 1: channel-changing block with a real masked skip conv (first=True).
    N, Cin, Cout, L = 2, 4, 8, 16
    x1 = jax.random.normal(kx1, (N, Cin, L), jnp.float32)
    params1 = init_params(kp1, Cin, Cout, first=True, include_skip=True)
    # Small max_rows_per_tile forces a multi-tile grid (2 tiles of 16 rows) so
    # the cross-tile BN statistics path is exercised.
    out1 = jax.block_until_ready(
        resnet_block_forward(x1, params1, max_rows_per_tile=16))
    ref1 = reference_forward(x1, params1)
    assert out1.shape == (N, Cout, L), out1.shape
    ok &= bool(jnp.allclose(out1, ref1, atol=1e-4, rtol=1e-4))

    # Case 2: same-channel block with nn.Identity skip (VPU-add path, first=False).
    C2 = 8
    x2 = jax.random.normal(kx2, (N, C2, L), jnp.float32)
    params2 = init_params(kp2, C2, C2, first=False, include_skip=False)
    out2 = jax.block_until_ready(
        resnet_block_forward(x2, params2, max_rows_per_tile=16))
    ref2 = reference_forward(x2, params2)
    assert out2.shape == (N, C2, L), out2.shape
    ok &= bool(jnp.allclose(out2, ref2, atol=1e-4, rtol=1e-4))

    assert ok, "mismatch vs reference"
    print("KERNEL_OK")
</pallas_src>

<mosaic_0001>
module attributes {stable_mosaic.version = 11 : i64} {
  func.func @_conv1_stats_kernel(%arg0: i32, %arg1: memref<16x8xf32, #tpu.memory_space<vmem>>, %arg2: memref<8x8xf32, #tpu.memory_space<vmem>>, %arg3: memref<8x8xf32, #tpu.memory_space<vmem>>) attributes {dimension_semantics = [#tpu.dimension_semantics<parallel>], iteration_bounds = array<i64: 2>, scalar_prefetch = 0 : i64, scratch_operands = 0 : i64, tpu.core_type = #tpu.core_type<tc>, window_params = [{transform_indices = @transform_0, window_bounds = array<i64: 16, 8>}, {pipeline_mode = #tpu.pipeline_mode<synchronous>, transform_indices = @transform_1, window_bounds = array<i64: 8, 8>}, {transform_indices = @transform_2, window_bounds = array<i64: 8, 8>}]} {
    %c0 = arith.constant 0 : index
    %c0_0 = arith.constant 0 : index
    %0 = vector.load %arg1[%c0, %c0_0] : memref<16x8xf32, #tpu.memory_space<vmem>>, vector<16x8xf32>
    %c0_1 = arith.constant 0 : index
    %c0_2 = arith.constant 0 : index
    %1 = vector.load %arg2[%c0_1, %c0_2] : memref<8x8xf32, #tpu.memory_space<vmem>>, vector<8x8xf32>
    %cst = arith.constant dense<0.000000e+00> : vector<16x8xf32>
    %2 = tpu.matmul %0, %1, %cst {dimension_numbers = #tpu.dot_dimension_numbers<[1], [0], [0], [1], [0, 0, 1, 1], [], []>} : vector<16x8xf32>, vector<8x8xf32>, vector<16x8xf32> -> vector<16x8xf32>
    %cst_3 = arith.constant dense<0.000000e+00> : vector<8xf32>
    %3 = vector.multi_reduction <add>, %2, %cst_3 [0] : vector<16x8xf32> to vector<8xf32>
    %4 = vector.shape_cast %3 : vector<8xf32> to vector<1x8xf32>
    %cst_4 = arith.constant 1.600000e+01 : f32
    %5 = vector.broadcast %cst_4 : f32 to vector<1x8xf32>
    %6 = arith.divf %4, %5 : vector<1x8xf32>
    %7 = vector.broadcast %6 : vector<1x8xf32> to vector<16x8xf32>
    %8 = arith.subf %2, %7 : vector<16x8xf32>
    %9 = arith.mulf %8, %8 : vector<16x8xf32>
    %cst_5 = arith.constant dense<0.000000e+00> : vector<8xf32>
    %10 = vector.multi_reduction <add>, %9, %cst_5 [0] : vector<16x8xf32> to vector<8xf32>
    %11 = vector.shape_cast %10 : vector<8xf32> to vector<1x8xf32>
    %cst_6 = arith.constant 0.000000e+00 : f32
    %12 = vector.broadcast %cst_6 : f32 to vector<6x8xf32>
    %13 = tpu.concatenate %4, %11, %12 in 0 : vector<1x8xf32>, vector<1x8xf32>, vector<6x8xf32> -> vector<8x8xf32>
    %c0_7 = arith.constant 0 : index
    %c0_8 = arith.constant 0 : index
    %14 = vector.load %arg3[%c0_7, %c0_8] : memref<8x8xf32, #tpu.memory_space<vmem>>, vector<8x8xf32>
    tpu.vector_store %arg3[%c0_7, %c0_8], %13 {strides = array<i32>} : memref<8x8xf32, #tpu.memory_space<vmem>>, vector<8x8xf32>,
    return
  }
  func.func @transform_0(%arg0: i32) -> (i32, i32) {
    %c0_i32 = arith.constant 0 : i32
    %c0_i32_0 = arith.constant 0 : i32
    return %arg0, %c0_i32 : i32, i32
  }
  func.func @transform_1(%arg0: i32) -> (i32, i32) {
    %c0_i32 = arith.constant 0 : i32
    %c0_i32_0 = arith.constant 0 : i32
    %c0_i32_1 = arith.constant 0 : i32
    return %c0_i32, %c0_i32_0 : i32, i32
  }
  func.func @transform_2(%arg0: i32) -> (i32, i32) {
    %c0_i32 = arith.constant 0 : i32
    %c0_i32_0 = arith.constant 0 : i32
    return %arg0, %c0_i32 : i32, i32
  }
}

</mosaic_0001>

<llo_original>
// kernel: tpu_custom_call.1
$region0: #{tpu_custom_call.1}
  #allocation0 [shape = 'u32[]', space=smem, size = 0x4, offset = 0x4, fixed_abs, tag = 'smem constant byte address 0x4 - core index']
  #allocation1 [shape = 'u32[144,128]{1,0:T(1,128)}', space=vmem, size = 0x12000, scoped, tag = 'internal scratch']
  %s0 = inlined_call_operand.vmem [shape: f32[32,8], index: 0, kind: input, shape index: {}]
  %s1 = inlined_call_operand.vmem [shape: f32[8,8], index: 1, kind: input, shape index: {}]
  %s2 = inlined_call_operand.vmem [shape: f32[16,8], index: 2, kind: output, shape index: {}]
  %s3 = sld [smem:[#allocation0]]
  $region41: #{tpu_custom_call.1} parent=0
    _
  %s5 = ssub.s32 1, %s3
  %s6 = scalar_select 0, %s5, %s3
  loop: start=0, step=1, limit=4
  $region2: #{tpu_custom_call.1} parent=0 // loop_pre_header
    _
  $region3: #{tpu_custom_call.1} parent=0 // loop_header
    %s8 = sphi 0, %s12
    %p9 = scmp.ge.s32.totalorder %s8, 4
    %s18 = sphi 0, %s20
    %s21 = sphi 0, %s18
    %s22 = sphi 0, %s21
    %s38 = sphi 0, %s22
    %s42 = sphi 0, %s42
    %s44 = sphi 0, %s42
    %s45 = sphi 0, %s44
    %s59 = sphi 0, %s45
    %s65 = sphi 0, %s67
    %s68 = sphi 0, %s65
    %s69 = sphi 0, %s68
    %s85 = sphi 0, %s69
  $region4: #{tpu_custom_call.1} parent=0 // loop_header_branch
    %11 = sbr.rel (%p9) target = $region8
  $region5: #{tpu_custom_call.1} parent=0 // loop_body
    %s13 = ssub.s32 %s8, 1
    %s14 = ssub.s32 %s8, 2
    %s15 = sadd.s32 %s8, 1
    %s16 = ssub.s32 %s8, %s15
    %p17 = scmp.eq.s32.totalorder %s16, 0
    %s19 = sadd.s32 %s18, 1
    %s20 = scalar_select %p17, %s18, %s19
    %p23 = pneg %p17
    %p24 = scmp.eq.s32.totalorder %s8, 1
    %p25 = por %p23, %p24
    %p26 = scmp.ne.s32.totalorder %s18, %s21
    %p27 = scmp.eq.s32.totalorder %s8, 0
    %p28 = por %p26, %p27
    %p29 = scmp.ne.s32.totalorder %s18, %s21
    %p30 = scmp.eq.s32.totalorder %s13, 1
    %p31 = por %p29, %p30
    %p32 = scmp.ne.s32.totalorder %s21, %s22
    %p33 = scmp.eq.s32.totalorder %s13, 0
    %p34 = por %p32, %p33
    %p35 = scmp.ne.s32.totalorder %s21, %s22
    %p36 = scmp.eq.s32.totalorder %s14, 1
    %p37 = por %p35, %p36
    %p39 = scmp.ne.s32.totalorder %s22, %s38
    %p40 = scmp.eq.s32.totalorder %s14, 0
    %p41 = por %p39, %p40
    %s43 = sadd.s32 %s42, 1
    %p46 = scmp.eq.s32.totalorder %s8, 1
    %p47 = scmp.ne.s32.totalorder %s42, %s44
    %p48 = scmp.eq.s32.totalorder %s8, 0
    %p49 = por %p47, %p48
    %p50 = scmp.ne.s32.totalorder %s42, %s44
    %p51 = scmp.eq.s32.totalorder %s13, 1
    %p52 = por %p50, %p51
    %p53 = scmp.ne.s32.totalorder %s44, %s45
    %p54 = scmp.eq.s32.totalorder %s13, 0
    %p55 = por %p53, %p54
    %p56 = scmp.ne.s32.totalorder %s44, %s45
    %p57 = scmp.eq.s32.totalorder %s14, 1
    %p58 = por %p56, %p57
    %p60 = scmp.ne.s32.totalorder %s45, %s59
    %p61 = scmp.eq.s32.totalorder %s14, 0
    %p62 = por %p60, %p61
    %s63 = ssub.s32 %s8, %s15
    %p64 = scmp.eq.s32.totalorder %s63, 0
    %s66 = sadd.s32 %s65, 1
    %s67 = scalar_select %p64, %s65, %s66
    %p70 = pneg %p64
    %p71 = scmp.eq.s32.totalorder %s8, 1
    %p72 = por %p70, %p71
    %p73 = scmp.ne.s32.totalorder %s65, %s68
    %p74 = scmp.eq.s32.totalorder %s8, 0
    %p75 = por %p73, %p74
    %p76 = scmp.ne.s32.totalorder %s65, %s68
    %p77 = scmp.eq.s32.totalorder %s13, 1
    %p78 = por %p76, %p77
    %p79 = scmp.ne.s32.totalorder %s68, %s69
    %p80 = scmp.eq.s32.totalorder %s13, 0
    %p81 = por %p79, %p80
    %p82 = scmp.ne.s32.totalorder %s68, %s69
    %p83 = scmp.eq.s32.totalorder %s14, 1
    %p84 = por %p82, %p83
    %p86 = scmp.ne.s32.totalorder %s69, %s85
    %p87 = scmp.eq.s32.totalorder %s14, 0
    %p88 = por %p86, %p87
    %p89 = scmp.le.s32.totalorder 1, %s8
    %p90 = scmp.lt.s32.totalorder %s8, 3
    %p91 = pnand %p89, %p90
    %p92 = pneg %p91
    // Predicated region
    $region9: #{tpu_custom_call.1} parent=5 // pred_check
      _
    $region10: #{tpu_custom_call.1} parent=5 // pred_check_branch
      %94 = sbr.rel (%p91) target = $region12
    $region11: #{tpu_custom_call.1} parent=5 // pred_region
      %s95 = ssub.s32 %s8, 1
      // Predicated region
      $region13: #{tpu_custom_call.1} parent=11 // pred_check
        %p96 = pneg %p55
      $region14: #{tpu_custom_call.1} parent=11 // pred_check_branch
        %98 = sbr.rel (%p96) target = $region16
      $region15: #{tpu_custom_call.1} parent=11 // pred_region
        _
      $region16: #{tpu_custom_call.1} parent=11 // pred_fallthru
        _
    $region12: #{tpu_custom_call.1} parent=5 // pred_fallthru
      _
    %p99 = scmp.lt.s32.totalorder %s8, 2
    // Predicated region
    $region17: #{tpu_custom_call.1} parent=5 // pred_check
      %p100 = pneg %p99
    $region18: #{tpu_custom_call.1} parent=5 // pred_check_branch
      %102 = sbr.rel (%p100) target = $region20
    $region19: #{tpu_custom_call.1} parent=5 // pred_region
      // Predicated region
      $region21: #{tpu_custom_call.1} parent=19 // pred_check
        %p103 = pneg %p28
      $region22: #{tpu_custom_call.1} parent=19 // pred_check_branch
        %105 = sbr.rel (%p103) target = $region24
      $region23: #{tpu_custom_call.1} parent=19 // pred_region
        %s106 = smul.u32 2, %s8
        %p107 = scmp.lt.s32.totalorder %s106, 3
        %s108 = scalar_select %p107, %s106, 3
        %s109 = smul.addr %s108, 8
        %s110 = scalar_lea.vmem %s0, %s109
        %s111 = smul.u32 2, %s8
      $region24: #{tpu_custom_call.1} parent=19 // pred_fallthru
        _
    $region20: #{tpu_custom_call.1} parent=5 // pred_fallthru
      _
    %p112 = scmp.le.s32.totalorder 1, %s8
    %p113 = scmp.lt.s32.totalorder %s8, 3
    %p114 = pnand %p112, %p113
    %p115 = pneg %p114
    // Predicated region
    $region25: #{tpu_custom_call.1} parent=5 // pred_check
      _
    $region26: #{tpu_custom_call.1} parent=5 // pred_check_branch
      %117 = sbr.rel (%p114) target = $region28
    $region27: #{tpu_custom_call.1} parent=5 // pred_region
      %s118 = ssub.s32 %s8, 1
      %s119 = smul.u32 2, %s13
      %p120 = scmp.lt.s32.totalorder %s119, 3
      %s121 = scalar_select %p120, %s119, 3
      %s122 = smul.addr %s121, 8
      %s123 = scalar_lea.vmem %s0, %s122
      %p124 = pneg %p34
      %p125 = pneg %p31
      %p126 = pneg %p55
      %p127 = pneg %p52
      %p128 = pneg %p81
      %p129 = pneg %p78
      %p130 = scmp.lt.s32.totalorder %s13, 1
      %s131 = scalar_select %p130, %s13, 1
      %s132 = smul.addr %s131, 8
      %s133 = scalar_lea.vmem %s2, %s132
      %s134 = smul.u32 2, %s13
      %p135 = scmp.lt.s32.totalorder %s134, 3
      %s136 = scalar_select %p135, %s134, 3
      %s137 = smul.addr %s136, 8
      %s138 = scalar_lea.vmem %s0, %s137
      %s139 = smul.u32 2, %s13
      %p140 = scmp.lt.s32.totalorder %s13, 1
      %s141 = scalar_select %p140, %s13, 1
      %s142 = smul.addr %s141, 8
      %s143 = scalar_lea.vmem %s2, %s142
      %v144 = vld [vmem:[%s138] sm:$0xff]
      %v145 = vld [vmem:[%s138 + $0x8] sm:$0xff]
      %v146 = vld [vmem:[%s1] sm:$0xff]
      %vm147 = vcmask 64512
      %v149 = vsel %vm147, %v144, 0
      %v152 = vsel %vm147, %v145, 0
      %154 = vmatprep.subr.mxu0 0.0
      %155 = vmatpush1.msra.mxu0 %v146
      %156 = vmatprep.subr.mxu0 0.0
      %157 = vmatpush1.msra.mxu0 0.0
      %158 = vmatprep.subr.mxu0 0.0
      %159 = vmatpush1.msra.mxu0 0.0
      %160 = vmatprep.subr.mxu0 0.0
      %161 = vmatpush1.msra.mxu0 0.0
      %162 = vmatprep.subr.mxu0 0.0
      %163 = vmatpush1.msra.mxu0 0.0
      %164 = vmatprep.subr.mxu0 0.0
      %165 = vmatpush1.msra.mxu0 0.0
      %166 = vmatprep.subr.mxu0 0.0
      %167 = vmatpush1.msra.mxu0 0.0
      %168 = vmatprep.subr.mxu0 0.0
      %169 = vmatpush1.msra.mxu0 0.0
      %170 = vmatprep.subr.mxu0 0.0
      %171 = vmatpush1.msra.mxu0 0.0
      %172 = vmatprep.subr.mxu0 0.0
      %173 = vmatpush1.msra.mxu0 0.0
      %174 = vmatprep.subr.mxu0 0.0
      %175 = vmatpush1.msra.mxu0 0.0
      %176 = vmatprep.subr.mxu0 0.0
      %177 = vmatpush1.msra.mxu0 0.0
      %178 = vmatprep.subr.mxu0 0.0
      %179 = vmatpush1.msra.mxu0 0.0
      %180 = vmatprep.subr.mxu0 0.0
      %181 = vmatpush1.msra.mxu0 0.0
      %182 = vmatprep.subr.mxu0 0.0
      %183 = vmatpush1.msra.mxu0 0.0
      %184 = vmatprep.subr.mxu0 0.0
      %185 = vmatpush1.msra.mxu0 0.0
      %186 = vmatprep.subr.mxu0 0.0
      %187 = vmatpush1.msra.mxu0 0.0
      %188 = vmatprep.subr.mxu0 0.0
      %189 = vmatpush1.msra.mxu0 0.0
      %190 = vmatprep.subr.mxu0 0.0
      %191 = vmatpush1.msra.mxu0 0.0
      %192 = vmatprep.subr.mxu0 0.0
      %193 = vmatpush1.msra.mxu0 0.0
      %194 = vmatprep.subr.mxu0 0.0
      %195 = vmatpush1.msra.mxu0 0.0
      %196 = vmatprep.subr.mxu0 0.0
      %197 = vmatpush1.msra.mxu0 0.0
      %198 = vmatprep.subr.mxu0 0.0
      %199 = vmatpush1.msra.mxu0 0.0
      %200 = vmatprep.subr.mxu0 0.0
      %201 = vmatpush1.msra.mxu0 0.0
      %202 = vmatprep.subr.mxu0 0.0
      %203 = vmatpush1.msra.mxu0 0.0
      %204 = vmatprep.subr.mxu0 0.0
      %205 = vmatpush1.msra.mxu0 0.0
      %206 = vmatprep.subr.mxu0 0.0
      %207 = vmatpush1.msra.mxu0 0.0
      %208 = vmatprep.subr.mxu0 0.0
      %209 = vmatpush1.msra.mxu0 0.0
      %210 = vmatprep.subr.mxu0 0.0
      %211 = vmatpush1.msra.mxu0 0.0
      %212 = vmatprep.subr.mxu0 0.0
      %213 = vmatpush1.msra.mxu0 0.0
      %214 = vmatprep.subr.mxu0 0.0
      %215 = vmatpush1.msra.mxu0 0.0
      %216 = vmatprep.subr.mxu0 0.0
      %217 = vmatpush1.msra.mxu0 0.0
      %218 = vmatprep.mubr.f32.mxu0 0.0
      %219 = vmatmul.mubr.f32.gmra.mrb[0].mxu0 %v149
      %v220 = vpop.f32.mrb[0].mxu0
      %v221 = vadd.f32 0.0, %v220
      %v222 = vpop.f32.mrb[0].mxu0
      %223 = vmatprep.mubr.f32.mxu0 0.0
      %224 = vmatmul.mubr.f32.gmra.mrb[0].mxu0 %v152
      %v225 = vpop.f32.mrb[0].mxu0
      %v226 = vadd.f32 0.0, %v225
      %v227 = vpop.f32.mrb[0].mxu0
      %228 = vdwg.mxu0
      %v229 = vsel %vm147, %v221, 0.0
      %v230 = vsel %vm147, %v226, 0.0
      %v231 = vadd.f32 %v229, %v230
      %v232 = vrot.slane %v231, 4
      %v233 = vadd.f32 %v231, %v232
      %v234 = vrot.slane %v233, 2
      %v235 = vadd.f32 %v233, %v234
      %v236 = vrot.slane %v235, 1
      %v237 = vadd.f32 %v235, %v236
      %v238 = vrcp.pop 16.0
      %v239 = vmul.f32 %v237, %v238
      %v240 = vsub.f32 %v221, %v239
      %v241 = vsub.f32 %v226, %v239
      %v242 = vmul.f32 %v240, %v240
      %v243 = vmul.f32 %v241, %v241
      %v244 = vsel %vm147, %v242, 0.0
      %v245 = vsel %vm147, %v243, 0.0
      %v246 = vadd.f32 %v244, %v245
      %v247 = vrot.slane %v246, 4
      %v248 = vadd.f32 %v246, %v247
      %v249 = vrot.slane %v248, 2
      %v250 = vadd.f32 %v248, %v249
      %v251 = vrot.slane %v250, 1
      %v252 = vadd.f32 %v250, %v251
      %vm253 = vcmask 1040384
      %v254 = vsel %vm253, %v237, %v252
      %vm255 = vcmask 1041408
      %v256 = vsel %vm255, %v254, 0.0
      %257 = vst.msk [vmem:[%s143] sm:$0xff] %vm147, %v256
      %p258 = scmp.lt.s32.totalorder %s13, 1
      %s259 = scalar_select %p258, %s13, 1
      %s260 = smul.addr %s259, 8
      %s261 = scalar_lea.vmem %s2, %s260
      // Predicated region
      $region29: #{tpu_custom_call.1} parent=27 // pred_check
        %p262 = pneg %p78
      $region30: #{tpu_custom_call.1} parent=27 // pred_check_branch
        %264 = sbr.rel (%p262) target = $region32
      $region31: #{tpu_custom_call.1} parent=27 // pred_region
        _
      $region32: #{tpu_custom_call.1} parent=27 // pred_fallthru
        _
    $region28: #{tpu_custom_call.1} parent=5 // pred_fallthru
      _
    %p265 = scmp.le.s32.totalorder 2, %s8
    // Predicated region
    $region33: #{tpu_custom_call.1} parent=5 // pred_check
      %p266 = pneg %p265
    $region34: #{tpu_custom_call.1} parent=5 // pred_check_branch
      %268 = sbr.rel (%p266) target = $region36
    $region35: #{tpu_custom_call.1} parent=5 // pred_region
      %s269 = ssub.s32 %s8, 2
      // Predicated region
      $region37: #{tpu_custom_call.1} parent=35 // pred_check
        %p270 = pneg %p84
      $region38: #{tpu_custom_call.1} parent=35 // pred_check_branch
        %272 = sbr.rel (%p270) target = $region40
      $region39: #{tpu_custom_call.1} parent=35 // pred_region
        %p273 = scmp.lt.s32.totalorder %s14, 1
        %s274 = scalar_select %p273, %s14, 1
        %s275 = smul.addr %s274, 8
        %s276 = scalar_lea.vmem %s2, %s275
      $region40: #{tpu_custom_call.1} parent=35 // pred_fallthru
        _
    $region36: #{tpu_custom_call.1} parent=5 // pred_fallthru
      _
  $region6: #{tpu_custom_call.1} parent=0 // loop_footer
    %s12 = sadd.s32 1, %s8
  $region7: #{tpu_custom_call.1} parent=0 // loop_footer_branch
    %7 = sbr.rel target = $region3
  $region8: #{tpu_custom_call.1} parent=0 // loop_exit
    _

</llo_original>
